<compile_context>
chip_gen: v7x
topology: tpu7x:2x2x1
jax: 0.10.0
libtpu: 0.0.40
codegen_flags: <defaults>
</compile_context>

<pallas_src>
import numpy as np
import jax
import jax.numpy as jnp
from jax.experimental import pallas as pl
from jax.experimental.pallas import tpu as pltpu

EMBEDDING_DIM = 300  # fastText sentence-vector size (hard-coded 300 in the module)


def _round_up(x, m):
    return ((x + m - 1) // m) * m


def _linear_kernel(x_ref, w_ref, b_ref, o_ref):
    """o = x @ w + b for one (batch-tile, out-tile).

    x_ref: (tb, D)      f32   activations (kept full precision)
    w_ref: (D, t_out)   f32/bf16 weight tile (upcast in VMEM -> weight-only quant)
    b_ref: (1, t_out)   f32   bias tile (broadcast over batch/sublanes)
    o_ref: (tb, t_out)  f32   output tile
    """
    x = x_ref[...].astype(jnp.float32)
    w = w_ref[...].astype(jnp.float32)
    acc = jnp.dot(x, w, preferred_element_type=jnp.float32)
    o_ref[...] = (acc + b_ref[...]).astype(o_ref.dtype)


@jax.jit
def fasttext_fc1(embeddings, weight_t, bias_row):
    """embeddings @ weight_t + bias via a single pallas_call (no pad, no slice).

    embeddings: (B, D)   f32
    weight_t:   (D, OUT) f32 or bf16  (fc1.weight^T, unpadded)
    bias_row:   (1, OUT) f32
    returns:    (B, OUT) f32
    """
    B, D = embeddings.shape
    D_w, OUT = weight_t.shape
    assert D == D_w

    # Batch tiling: full-array block for small B (full dims bypass the sublane
    # rule); 256-row tiles (8-multiple, MXU-friendly) for serving-sized batches.
    tile_b = B if B <= 256 else 256
    # Split OUT into two lane-aligned halves so v7x's two TensorCores each get
    # half of the dominant weight stream; edge overhang is discarded by Pallas.
    tile_out = _round_up(pl.cdiv(OUT, 2), 128) if OUT > 256 else OUT
    grid = (pl.cdiv(B, tile_b), pl.cdiv(OUT, tile_out))

    w_bytes = jnp.dtype(weight_t.dtype).itemsize
    cost = pl.CostEstimate(
        flops=2 * B * D * OUT,
        transcendentals=0,
        bytes_accessed=(
            B * D * 4            # activations
            + D * OUT * w_bytes  # weight (dominant stream)
            + OUT * 4            # bias
            + B * OUT * 4        # output
        ),
    )

    return pl.pallas_call(
        _linear_kernel,
        out_shape=jax.ShapeDtypeStruct((B, OUT), jnp.float32),
        grid_spec=pltpu.PrefetchScalarGridSpec(
            num_scalar_prefetch=0,
            grid=grid,
            in_specs=[
                pl.BlockSpec((tile_b, D), lambda i, j: (i, 0)),       # x: batch tile
                pl.BlockSpec((D, tile_out), lambda i, j: (0, j)),     # w: out-half
                pl.BlockSpec((1, tile_out), lambda i, j: (0, j)),     # b: out-half
            ],
            out_specs=pl.BlockSpec((tile_b, tile_out), lambda i, j: (i, j)),
        ),
        compiler_params=pltpu.CompilerParams(
            dimension_semantics=("parallel", "parallel"),
        ),
        cost_estimate=cost,
    )(embeddings, weight_t, bias_row)


class FasttextModelPallas:
    """Deterministic JAX/Pallas port of Fasttext_model (forward only)."""

    def __init__(self, embedding_dim, cross_entropy="False", key=None,
                 param_dtype=jnp.bfloat16):
        self.embedding_dim = embedding_dim
        self.cross_entropy = cross_entropy
        if cross_entropy == "False":
            self.out_features = 2 * 9 * 9 * 9   # 1458
        elif cross_entropy == "True":
            self.out_features = 9 * 9 * 9       # 729
        else:
            raise ValueError("cross_entropy must be 'True' or 'False' (string)")

        if key is None:
            key = jax.random.PRNGKey(0)
        k_w, k_b = jax.random.split(key)
        # nn.Linear default init: U(-1/sqrt(in), +1/sqrt(in))
        bound = 1.0 / np.sqrt(embedding_dim)
        w = jax.random.uniform(
            k_w, (self.out_features, embedding_dim), jnp.float32, -bound, bound
        )
        b = jax.random.uniform(k_b, (self.out_features,), jnp.float32, -bound, bound)

        # Stored pre-transposed, UNPADDED (full-extent block in the kernel).
        # param_dtype=bf16 (default) = weight-only low precision: activations
        # stay f32 and the kernel upcasts the weight before the f32 MXU dot.
        self.weight_t = jnp.asarray(w.T, dtype=param_dtype)      # (D, OUT)
        self.bias_row = jnp.asarray(b, jnp.float32).reshape(1, -1)  # (1, OUT)

    def forward(self, embeddings):
        # TODO(synk): ft_model.get_sentence_vector is an external fastText C call;
        # the (B, 300) embedding matrix is taken directly as the kernel input.
        return fasttext_fc1(
            jnp.asarray(embeddings, jnp.float32), self.weight_t, self.bias_row
        )


if __name__ == "__main__":
    key = jax.random.PRNGKey(0)
    k_model, k_emb = jax.random.split(key)

    batch = 2
    # Stand-in for ft_model.get_sentence_vector(descriptions[i]) per sample.
    embeddings = jax.random.normal(k_emb, (batch, EMBEDDING_DIM), jnp.float32)
    emb_np = np.asarray(embeddings)

    # --- default (bf16 weight storage, weight-only quant) ----------------------
    model = FasttextModelPallas(EMBEDDING_DIM, cross_entropy="False", key=k_model)
    out = jax.block_until_ready(model.forward(embeddings))
    assert out.shape == (batch, 2 * 9 * 9 * 9)
    w_up = np.asarray(model.weight_t.astype(jnp.float32))
    ref = emb_np @ w_up + np.asarray(model.bias_row)[0]
    np.testing.assert_allclose(np.asarray(out), ref, rtol=1e-3, atol=1e-3)

    # --- f32 weights: parity with the f32 reference ----------------------------
    model_f32 = FasttextModelPallas(
        EMBEDDING_DIM, cross_entropy="False", key=k_model, param_dtype=jnp.float32
    )
    out_f32 = jax.block_until_ready(model_f32.forward(embeddings))
    assert out_f32.shape == (batch, 2 * 9 * 9 * 9)
    ref_f32 = emb_np @ np.asarray(model_f32.weight_t) + np.asarray(model_f32.bias_row)[0]
    np.testing.assert_allclose(np.asarray(out_f32), ref_f32, rtol=1e-5, atol=1e-4)

    # --- cross_entropy == 'True' head (729 outputs) -----------------------------
    model_ce = FasttextModelPallas(
        EMBEDDING_DIM, cross_entropy="True", key=k_model, param_dtype=jnp.float32
    )
    out_ce = jax.block_until_ready(model_ce.forward(embeddings))
    assert out_ce.shape == (batch, 9 * 9 * 9)
    ref_ce = emb_np @ np.asarray(model_ce.weight_t) + np.asarray(model_ce.bias_row)[0]
    np.testing.assert_allclose(np.asarray(out_ce), ref_ce, rtol=1e-5, atol=1e-4)

    print("KERNEL_OK")
</pallas_src>

<mosaic_0001>
module attributes {stable_mosaic.version = 11 : i64} {
  func.func @_linear_kernel(%arg0: i32, %arg1: i32, %arg2: memref<2x300xf32, #tpu.memory_space<vmem>>, %arg3: memref<300x768xbf16, #tpu.memory_space<vmem>>, %arg4: memref<1x768xf32, #tpu.memory_space<vmem>>, %arg5: memref<2x768xf32, #tpu.memory_space<vmem>>) attributes {dimension_semantics = [#tpu.dimension_semantics<parallel>, #tpu.dimension_semantics<parallel>], iteration_bounds = array<i64: 1, 2>, scalar_prefetch = 0 : i64, scratch_operands = 0 : i64, tpu.core_type = #tpu.core_type<tc>, window_params = [{transform_indices = @transform_0, window_bounds = array<i64: 2, 300>}, {transform_indices = @transform_1, window_bounds = array<i64: 300, 768>}, {transform_indices = @transform_2, window_bounds = array<i64: 1, 768>}, {transform_indices = @transform_3, window_bounds = array<i64: 2, 768>}]} {
    %c0 = arith.constant 0 : index
    %c0_0 = arith.constant 0 : index
    %0 = vector.load %arg2[%c0, %c0_0] : memref<2x300xf32, #tpu.memory_space<vmem>>, vector<2x300xf32>
    %c0_1 = arith.constant 0 : index
    %c0_2 = arith.constant 0 : index
    %1 = vector.load %arg3[%c0_1, %c0_2] : memref<300x768xbf16, #tpu.memory_space<vmem>>, vector<300x768xbf16>
    %2 = arith.extf %1 : vector<300x768xbf16> to vector<300x768xf32>
    %cst = arith.constant dense<0.000000e+00> : vector<2x768xf32>
    %3 = tpu.matmul %0, %2, %cst {dimension_numbers = #tpu.dot_dimension_numbers<[1], [0], [0], [1], [0, 0, 1, 1], [], []>} : vector<2x300xf32>, vector<300x768xf32>, vector<2x768xf32> -> vector<2x768xf32>
    %c0_3 = arith.constant 0 : index
    %c0_4 = arith.constant 0 : index
    %4 = vector.load %arg4[%c0_3, %c0_4] : memref<1x768xf32, #tpu.memory_space<vmem>>, vector<1x768xf32>
    %5 = vector.broadcast %4 : vector<1x768xf32> to vector<2x768xf32>
    %6 = arith.addf %3, %5 : vector<2x768xf32>
    %c0_5 = arith.constant 0 : index
    %c0_6 = arith.constant 0 : index
    %7 = vector.load %arg5[%c0_5, %c0_6] : memref<2x768xf32, #tpu.memory_space<vmem>>, vector<2x768xf32>
    tpu.vector_store %arg5[%c0_5, %c0_6], %6 {strides = array<i32>} : memref<2x768xf32, #tpu.memory_space<vmem>>, vector<2x768xf32>,
    return
  }
  func.func @transform_0(%arg0: i32, %arg1: i32) -> (i32, i32) {
    %c0_i32 = arith.constant 0 : i32
    %c0_i32_0 = arith.constant 0 : i32
    return %arg0, %c0_i32 : i32, i32
  }
  func.func @transform_1(%arg0: i32, %arg1: i32) -> (i32, i32) {
    %c0_i32 = arith.constant 0 : i32
    %c0_i32_0 = arith.constant 0 : i32
    return %c0_i32, %arg1 : i32, i32
  }
  func.func @transform_2(%arg0: i32, %arg1: i32) -> (i32, i32) {
    %c0_i32 = arith.constant 0 : i32
    %c0_i32_0 = arith.constant 0 : i32
    return %c0_i32, %arg1 : i32, i32
  }
  func.func @transform_3(%arg0: i32, %arg1: i32) -> (i32, i32) {
    %c0_i32 = arith.constant 0 : i32
    return %arg0, %arg1 : i32, i32
  }
}

</mosaic_0001>

<llo_original>
// kernel: fasttext_fc1.1
$region0: #{fasttext_fc1.1}
  #allocation0 [shape = 'u32[]', space=smem, size = 0x4, offset = 0x4, fixed_abs, tag = 'smem constant byte address 0x4 - core index']
  #allocation1 [shape = 'u32[144,128]{1,0:T(1,128)}', space=vmem, size = 0x12000, scoped, tag = 'internal scratch']
  %s0 = inlined_call_operand.hbm [shape: f32[2,300], index: 0, kind: input, shape index: {}]
  %s1 = inlined_call_operand.hbm [shape: bf16[300,1458], index: 1, kind: input, shape index: {}]
  %s2 = inlined_call_operand.hbm [shape: f32[1,1458], index: 2, kind: input, shape index: {}]
  %s3 = inlined_call_operand.hbm [shape: f32[2,1458], index: 3, kind: output, shape index: {}]
  %s4 = sld [smem:[#allocation0]]
  $region57: #{fasttext_fc1.1} parent=0
    _
  %s6 = ssub.s32 1, %s4
  %s7 = scalar_select 0, %s6, %s4
  $region1: #{fasttext_fc1.1} parent=0
    #allocation2 [shape = 'u8[3072]{0}', space=vmem, size = 0xc00, scoped, tag = 'input window, operand 0, single buffered']
    #allocation3 [shape = 's32[2]{0}', space=sflag, size = 0x8, scoped, tag = 'scoped memory for fasttext_fc1.1']
    #allocation4 [shape = 's32[2]{0}', space=sflag, size = 0x8, scoped, tag = 'scoped memory for fasttext_fc1.1']
    #allocation5 [shape = 'u8[933888]{0}', space=vmem, size = 0xe4000, scoped, tag = 'input window, operand 1']
    #allocation6 [shape = 's32[2]{0}', space=sflag, size = 0x8, scoped, tag = 'scoped memory for fasttext_fc1.1']
    #allocation7 [shape = 'u8[6144]{0}', space=vmem, size = 0x1800, scoped, tag = 'input window, operand 2']
    #allocation8 [shape = 'u8[12288]{0}', space=vmem, size = 0x3000, scoped, tag = 'output window, operand 0']
    %8 = vsyncpa [#allocation3], 0
    %9 = vsyncpa [#allocation6], 0
    %s10 = scalar_lea.sflag [#allocation6], 1
    %11 = vsyncpa %s10, 0
    %12 = vsyncpa [#allocation4], 0
    %s13 = scalar_lea.sflag [#allocation4], 1
    %14 = vsyncpa %s13, 0
    loop: start=0, step=1, limit=4
    $region2: #{fasttext_fc1.1} parent=1 // loop_pre_header
      _
    $region3: #{fasttext_fc1.1} parent=1 // loop_header
      %s16 = sphi 0, %s20
      %p17 = scmp.ge.s32.totalorder %s16, 4
      %s23 = sphi 0, %s35
      %s24 = sphi 0, %s31
      %s25 = sphi 0, %s23
      %s26 = sphi 0, %s24
      %s27 = sphi 0, %s25
      %s28 = sphi 0, %s26
      %s38 = sphi 0, %s40
      %s41 = sphi 0, %s38
      %s42 = sphi 0, %s41
      %s58 = sphi 0, %s42
      %s64 = sphi 0, %s66
      %s67 = sphi 0, %s64
      %s68 = sphi 0, %s67
      %s84 = sphi 0, %s68
      %s90 = sphi 0, %s92
      %s93 = sphi 0, %s90
      %s94 = sphi 0, %s93
      %s110 = sphi 0, %s94
      %s118 = sphi 0, %s120
      %s121 = sphi 0, %s118
      %s122 = sphi 0, %s121
      %s138 = sphi 0, %s122
    $region4: #{fasttext_fc1.1} parent=1 // loop_header_branch
      %19 = sbr.rel (%p17) target = $region8
    $region5: #{fasttext_fc1.1} parent=1 // loop_body
      %s21 = ssub.s32 %s16, 1
      %s22 = ssub.s32 %s16, 2
      %s29 = sadd.s32 1, %s24
      %p30 = scmp.ge.s32.totalorder %s29, 2
      %s31 = scalar_select %p30, 0, %s29
      %s32 = sadd.s32 1, %s23
      %s33 = scalar_select %p30, %s32, %s23
      %p34 = scmp.ge.s32.totalorder %s33, 1
      %s35 = scalar_select %p34, 0, %s33
      %s36 = ssub.s32 %s23, %s35
      %p37 = scmp.eq.s32.totalorder %s36, 0
      %s39 = sadd.s32 %s38, 1
      %s40 = scalar_select %p37, %s38, %s39
      %p43 = pneg %p37
      %p44 = scmp.eq.s32.totalorder %s16, 1
      %p45 = por %p43, %p44
      %p46 = scmp.ne.s32.totalorder %s38, %s41
      %p47 = scmp.eq.s32.totalorder %s16, 0
      %p48 = por %p46, %p47
      %p49 = scmp.ne.s32.totalorder %s38, %s41
      %p50 = scmp.eq.s32.totalorder %s21, 1
      %p51 = por %p49, %p50
      %p52 = scmp.ne.s32.totalorder %s41, %s42
      %p53 = scmp.eq.s32.totalorder %s21, 0
      %p54 = por %p52, %p53
      %p55 = scmp.ne.s32.totalorder %s41, %s42
      %p56 = scmp.eq.s32.totalorder %s22, 1
      %p57 = por %p55, %p56
      %p59 = scmp.ne.s32.totalorder %s42, %s58
      %p60 = scmp.eq.s32.totalorder %s22, 0
      %p61 = por %p59, %p60
      %s62 = ssub.s32 %s24, %s31
      %p63 = scmp.eq.s32.totalorder %s62, 0
      %s65 = sadd.s32 %s64, 1
      %s66 = scalar_select %p63, %s64, %s65
      %p69 = pneg %p63
      %p70 = scmp.eq.s32.totalorder %s16, 1
      %p71 = por %p69, %p70
      %p72 = scmp.ne.s32.totalorder %s64, %s67
      %p73 = scmp.eq.s32.totalorder %s16, 0
      %p74 = por %p72, %p73
      %p75 = scmp.ne.s32.totalorder %s64, %s67
      %p76 = scmp.eq.s32.totalorder %s21, 1
      %p77 = por %p75, %p76
      %p78 = scmp.ne.s32.totalorder %s67, %s68
      %p79 = scmp.eq.s32.totalorder %s21, 0
      %p80 = por %p78, %p79
      %p81 = scmp.ne.s32.totalorder %s67, %s68
      %p82 = scmp.eq.s32.totalorder %s22, 1
      %p83 = por %p81, %p82
      %p85 = scmp.ne.s32.totalorder %s68, %s84
      %p86 = scmp.eq.s32.totalorder %s22, 0
      %p87 = por %p85, %p86
      %s88 = ssub.s32 %s24, %s31
      %p89 = scmp.eq.s32.totalorder %s88, 0
      %s91 = sadd.s32 %s90, 1
      %s92 = scalar_select %p89, %s90, %s91
      %p95 = pneg %p89
      %p96 = scmp.eq.s32.totalorder %s16, 1
      %p97 = por %p95, %p96
      %p98 = scmp.ne.s32.totalorder %s90, %s93
      %p99 = scmp.eq.s32.totalorder %s16, 0
      %p100 = por %p98, %p99
      %p101 = scmp.ne.s32.totalorder %s90, %s93
      %p102 = scmp.eq.s32.totalorder %s21, 1
      %p103 = por %p101, %p102
      %p104 = scmp.ne.s32.totalorder %s93, %s94
      %p105 = scmp.eq.s32.totalorder %s21, 0
      %p106 = por %p104, %p105
      %p107 = scmp.ne.s32.totalorder %s93, %s94
      %p108 = scmp.eq.s32.totalorder %s22, 1
      %p109 = por %p107, %p108
      %p111 = scmp.ne.s32.totalorder %s94, %s110
      %p112 = scmp.eq.s32.totalorder %s22, 0
      %p113 = por %p111, %p112
      %s114 = ssub.s32 %s23, %s35
      %s115 = ssub.s32 %s24, %s31
      %s116 = sor.u32 %s114, %s115
      %p117 = scmp.eq.s32.totalorder %s116, 0
      %s119 = sadd.s32 %s118, 1
      %s120 = scalar_select %p117, %s118, %s119
      %p123 = pneg %p117
      %p124 = scmp.eq.s32.totalorder %s16, 1
      %p125 = por %p123, %p124
      %p126 = scmp.ne.s32.totalorder %s118, %s121
      %p127 = scmp.eq.s32.totalorder %s16, 0
      %p128 = por %p126, %p127
      %p129 = scmp.ne.s32.totalorder %s118, %s121
      %p130 = scmp.eq.s32.totalorder %s21, 1
      %p131 = por %p129, %p130
      %p132 = scmp.ne.s32.totalorder %s121, %s122
      %p133 = scmp.eq.s32.totalorder %s21, 0
      %p134 = por %p132, %p133
      %p135 = scmp.ne.s32.totalorder %s121, %s122
      %p136 = scmp.eq.s32.totalorder %s22, 1
      %p137 = por %p135, %p136
      %p139 = scmp.ne.s32.totalorder %s122, %s138
      %p140 = scmp.eq.s32.totalorder %s22, 0
      %p141 = por %p139, %p140
      %p142 = scmp.le.s32.totalorder 1, %s16
      %p143 = scmp.lt.s32.totalorder %s16, 3
      %p144 = pnand %p142, %p143
      %p145 = pneg %p144
      // Predicated region
      $region9: #{fasttext_fc1.1} parent=5 // pred_check
        _
      $region10: #{fasttext_fc1.1} parent=5 // pred_check_branch
        %147 = sbr.rel (%p144) target = $region12
      $region11: #{fasttext_fc1.1} parent=5 // pred_region
        %s148 = ssub.s32 %s16, 1
        // Predicated region
        $region13: #{fasttext_fc1.1} parent=11 // pred_check
          %p149 = pneg %p54
        $region14: #{fasttext_fc1.1} parent=11 // pred_check_branch
          %151 = sbr.rel (%p149) target = $region16
        $region15: #{fasttext_fc1.1} parent=11 // pred_region
          %s153 = ssub.s32 96, 96
          %154 = vsyncadd [#allocation3], %s153
          %s155 = smul.addr %s25, 3
          %s156 = smul.addr %s155, 32
          %s157 = scalar_lea.hbm %s0, %s156
          %s159 = sshll.u32 [#allocation2], 4
          %s160 = int_to_ptr.vmem [resolvable:$true] %s159
          %162 = dma.hbm_to_vmem [thread:$0]  %s157, 96, %s160, [#allocation3]
        $region16: #{fasttext_fc1.1} parent=11 // pred_fallthru
          _
      $region12: #{fasttext_fc1.1} parent=5 // pred_fallthru
        _
      %p163 = scmp.lt.s32.totalorder %s16, 2
      // Predicated region
      $region17: #{fasttext_fc1.1} parent=5 // pred_check
        %p164 = pneg %p163
      $region18: #{fasttext_fc1.1} parent=5 // pred_check_branch
        %166 = sbr.rel (%p164) target = $region20
      $region19: #{fasttext_fc1.1} parent=5 // pred_region
        // Predicated region
        $region21: #{fasttext_fc1.1} parent=19 // pred_check
          %p167 = pneg %p74
        $region22: #{fasttext_fc1.1} parent=19 // pred_check_branch
          %169 = sbr.rel (%p167) target = $region24
        $region23: #{fasttext_fc1.1} parent=19 // pred_region
          %s170 = sand.u32 %s16, 1
          %s171 = scalar_lea.sflag [#allocation6], %s170
          %s172 = sand.u32 %s64, 1
          %s173 = smul.addr %s172, 912
          %s174 = scalar_lea.vmem [#allocation5], %s173
          %s175 = smul.u32 6, %s24
          %s177 = ssub.s32 14592, 14592
          %178 = vsyncadd %s171, %s177
          %s179 = smul.addr %s175, 64
          %s180 = scalar_lea.hbm %s1, %s179
          %s181 = sshll.u32 %s174, 4
          %s182 = int_to_ptr.vmem [resolvable:$true] %s181
          %187 = dma.hbm_to_vmem [thread:$0]  %s180, 14592, %s182, %s171, 768, 384, 24
        $region24: #{fasttext_fc1.1} parent=19 // pred_fallthru
          _
        // Predicated region
        $region25: #{fasttext_fc1.1} parent=19 // pred_check
          %p188 = pneg %p100
        $region26: #{fasttext_fc1.1} parent=19 // pred_check_branch
          %190 = sbr.rel (%p188) target = $region28
        $region27: #{fasttext_fc1.1} parent=19 // pred_region
          %s191 = sand.u32 %s16, 1
          %s192 = scalar_lea.sflag [#allocation6], %s191
          %s193 = sand.u32 %s90, 1
          %s194 = smul.addr %s193, 6
          %s195 = scalar_lea.vmem [#allocation7], %s194
          %s196 = smul.u32 6, %s24
          %s198 = ssub.s32 96, 96
          %199 = vsyncadd %s192, %s198
          %s200 = smul.addr %s196, 16
          %s201 = scalar_lea.hbm %s2, %s200
          %s203 = sshll.u32 %s195, 4
          %s204 = int_to_ptr.vmem [resolvable:$true] %s203
          %206 = dma.hbm_to_vmem [thread:$0]  %s201, 96, %s204, %s192
        $region28: #{fasttext_fc1.1} parent=19 // pred_fallthru
          _
      $region20: #{fasttext_fc1.1} parent=5 // pred_fallthru
        _
      %p207 = scmp.le.s32.totalorder 1, %s16
      %p208 = scmp.lt.s32.totalorder %s16, 3
      %p209 = pnand %p207, %p208
      %p210 = pneg %p209
      // Predicated region
      $region29: #{fasttext_fc1.1} parent=5 // pred_check
        _
      $region30: #{fasttext_fc1.1} parent=5 // pred_check_branch
        %212 = sbr.rel (%p209) target = $region32
      $region31: #{fasttext_fc1.1} parent=5 // pred_region
        %s213 = ssub.s32 %s16, 1
        // Predicated region
        $region33: #{fasttext_fc1.1} parent=31 // pred_check
          %p214 = pneg %p54
        $region34: #{fasttext_fc1.1} parent=31 // pred_check_branch
          %216 = sbr.rel (%p214) target = $region36
        $region35: #{fasttext_fc1.1} parent=31 // pred_region
          %217 = dma.done [#allocation3], 96
        $region36: #{fasttext_fc1.1} parent=31 // pred_fallthru
          _
        %s218 = sand.u32 %s21, 1
        %s219 = scalar_lea.sflag [#allocation6], %s218
        %s220 = sand.u32 %s67, 1
        %s221 = smul.addr %s220, 912
        %s222 = scalar_lea.vmem [#allocation5], %s221
        // Predicated region
        $region37: #{fasttext_fc1.1} parent=31 // pred_check
          %p223 = pneg %p80
        $region38: #{fasttext_fc1.1} parent=31 // pred_check_branch
          %225 = sbr.rel (%p223) target = $region40
        $region39: #{fasttext_fc1.1} parent=31 // pred_region
          %226 = dma.done %s219, 14592
        $region40: #{fasttext_fc1.1} parent=31 // pred_fallthru
          _
        %s227 = sand.u32 %s21, 1
        %s228 = scalar_lea.sflag [#allocation6], %s227
        %s229 = sand.u32 %s93, 1
        %s230 = smul.addr %s229, 6
        %s231 = scalar_lea.vmem [#allocation7], %s230
        // Predicated region
        $region41: #{fasttext_fc1.1} parent=31 // pred_check
          %p232 = pneg %p106
        $region42: #{fasttext_fc1.1} parent=31 // pred_check_branch
          %234 = sbr.rel (%p232) target = $region44
        $region43: #{fasttext_fc1.1} parent=31 // pred_region
          %235 = dma.done %s228, 96
        $region44: #{fasttext_fc1.1} parent=31 // pred_fallthru
          _
        %p236 = pneg %p54
        %p237 = pneg %p51
        %s238 = sand.u32 %s21, 1
        %s239 = scalar_lea.sflag [#allocation6], %s238
        %s240 = sand.u32 %s67, 1
        %s241 = smul.addr %s240, 912
        %s242 = scalar_lea.vmem [#allocation5], %s241
        %p243 = pneg %p80
        %p244 = pneg %p77
        %s245 = sand.u32 %s21, 1
        %s246 = scalar_lea.sflag [#allocation6], %s245
        %s247 = sand.u32 %s93, 1
        %s248 = smul.addr %s247, 6
        %s249 = scalar_lea.vmem [#allocation7], %s248
        %p250 = pneg %p106
        %p251 = pneg %p103
        %p252 = pneg %p134
        %p253 = pneg %p131
        %s254 = sand.u32 %s121, 1
        %s255 = scalar_lea.sflag [#allocation4], %s254
        %s256 = sand.u32 %s121, 1
        %s257 = smul.addr %s256, 12
        %s258 = scalar_lea.vmem [#allocation8], %s257
        %s259 = smul.u32 6, %s26
        %s260 = smul.u32 6, %s26
        %s261 = smul.u32 6, %s26
        %v262 = vld [vmem:[#allocation2] sm:$0x3f]
        %v263 = vld [vmem:[%s222] sm:$0xff]
        %v264 = vld [vmem:[%s222 + $0x8] sm:$0xff]
        %v265 = vld [vmem:[%s222 + $0x10] sm:$0xff]
        %v266 = vld [vmem:[%s222 + $0x18] sm:$0xff]
        %v267 = vld [vmem:[%s222 + $0x20] sm:$0xff]
        %v268 = vld [vmem:[%s222 + $0x28] sm:$0xff]
        %v269 = vld [vmem:[%s222 + $0x30] sm:$0xff]
        %v270 = vld [vmem:[%s222 + $0x38] sm:$0xff]
        %v271 = vld [vmem:[%s222 + $0x40] sm:$0xff]
        %v272 = vld [vmem:[%s222 + $0x48] sm:$0xff]
        %v273 = vld [vmem:[%s222 + $0x50] sm:$0xff]
        %v274 = vld [vmem:[%s222 + $0x58] sm:$0xff]
        %v275 = vld [vmem:[%s222 + $0x60] sm:$0xff]
        %v276 = vld [vmem:[%s222 + $0x68] sm:$0xff]
        %v277 = vld [vmem:[%s222 + $0x70] sm:$0xff]
        %v278 = vld [vmem:[%s222 + $0x78] sm:$0xff]
        %v279 = vld [vmem:[%s222 + $0x80] sm:$0xff]
        %v280 = vld [vmem:[%s222 + $0x88] sm:$0xff]
        %v281 = vld [vmem:[%s222 + $0x90] sm:$0xff]
        %v282 = vld [vmem:[%s222 + $0x98] sm:$0xff]
        %v283 = vld [vmem:[%s222 + $0xa0] sm:$0xff]
        %v284 = vld [vmem:[%s222 + $0xa8] sm:$0xff]
        %v285 = vld [vmem:[%s222 + $0xb0] sm:$0xff]
        %v286 = vld [vmem:[%s222 + $0xb8] sm:$0xff]
        %v287 = vld [vmem:[%s222 + $0xc0] sm:$0xff]
        %v288 = vld [vmem:[%s222 + $0xc8] sm:$0xff]
        %v289 = vld [vmem:[%s222 + $0xd0] sm:$0xff]
        %v290 = vld [vmem:[%s222 + $0xd8] sm:$0xff]
        %v291 = vld [vmem:[%s222 + $0xe0] sm:$0xff]
        %v292 = vld [vmem:[%s222 + $0xe8] sm:$0xff]
        %v293 = vld [vmem:[%s222 + $0xf0] sm:$0xff]
        %v294 = vld [vmem:[%s222 + $0xf8] sm:$0xff]
        %v295 = vld [vmem:[%s222 + $0x100] sm:$0xff]
        %v296 = vld [vmem:[%s222 + $0x108] sm:$0xff]
        %v297 = vld [vmem:[%s222 + $0x110] sm:$0xff]
        %v298 = vld [vmem:[%s222 + $0x118] sm:$0xff]
        %v299 = vld [vmem:[%s222 + $0x120] sm:$0xff]
        %v300 = vld [vmem:[%s222 + $0x128] sm:$0xff]
        %v301 = vld [vmem:[%s222 + $0x130] sm:$0xff]
        %v302 = vld [vmem:[%s222 + $0x138] sm:$0xff]
        %v303 = vld [vmem:[%s222 + $0x140] sm:$0xff]
        %v304 = vld [vmem:[%s222 + $0x148] sm:$0xff]
        %v305 = vld [vmem:[%s222 + $0x150] sm:$0xff]
        %v306 = vld [vmem:[%s222 + $0x158] sm:$0xff]
        %v307 = vld [vmem:[%s222 + $0x160] sm:$0xff]
        %v308 = vld [vmem:[%s222 + $0x168] sm:$0xff]
        %v309 = vld [vmem:[%s222 + $0x170] sm:$0xff]
        %v310 = vld [vmem:[%s222 + $0x178] sm:$0xff]
        %v311 = vld [vmem:[%s222 + $0x180] sm:$0xff]
        %v312 = vld [vmem:[%s222 + $0x188] sm:$0xff]
        %v313 = vld [vmem:[%s222 + $0x190] sm:$0xff]
        %v314 = vld [vmem:[%s222 + $0x198] sm:$0xff]
        %v315 = vld [vmem:[%s222 + $0x1a0] sm:$0xff]
        %v316 = vld [vmem:[%s222 + $0x1a8] sm:$0xff]
        %v317 = vld [vmem:[%s222 + $0x1b0] sm:$0xff]
        %v318 = vld [vmem:[%s222 + $0x1b8] sm:$0xff]
        %v319 = vld [vmem:[%s222 + $0x1c0] sm:$0xff]
        %v320 = vld [vmem:[%s222 + $0x1c8] sm:$0xff]
        %v321 = vld [vmem:[%s222 + $0x1d0] sm:$0xff]
        %v322 = vld [vmem:[%s222 + $0x1d8] sm:$0xff]
        %v323 = vld [vmem:[%s222 + $0x1e0] sm:$0xff]
        %v324 = vld [vmem:[%s222 + $0x1e8] sm:$0xff]
        %v325 = vld [vmem:[%s222 + $0x1f0] sm:$0xff]
        %v326 = vld [vmem:[%s222 + $0x1f8] sm:$0xff]
        %v327 = vld [vmem:[%s222 + $0x200] sm:$0xff]
        %v328 = vld [vmem:[%s222 + $0x208] sm:$0xff]
        %v329 = vld [vmem:[%s222 + $0x210] sm:$0xff]
        %v330 = vld [vmem:[%s222 + $0x218] sm:$0xff]
        %v331 = vld [vmem:[%s222 + $0x220] sm:$0xff]
        %v332 = vld [vmem:[%s222 + $0x228] sm:$0xff]
        %v333 = vld [vmem:[%s222 + $0x230] sm:$0xff]
        %v334 = vld [vmem:[%s222 + $0x238] sm:$0xff]
        %v335 = vld [vmem:[%s222 + $0x240] sm:$0xff]
        %v336 = vld [vmem:[%s222 + $0x248] sm:$0xff]
        %v337 = vld [vmem:[%s222 + $0x250] sm:$0xff]
        %v338 = vld [vmem:[%s222 + $0x258] sm:$0xff]
        %v339 = vld [vmem:[%s222 + $0x260] sm:$0xff]
        %v340 = vld [vmem:[%s222 + $0x268] sm:$0xff]
        %v341 = vld [vmem:[%s222 + $0x270] sm:$0xff]
        %v342 = vld [vmem:[%s222 + $0x278] sm:$0xff]
        %v343 = vld [vmem:[%s222 + $0x280] sm:$0xff]
        %v344 = vld [vmem:[%s222 + $0x288] sm:$0xff]
        %v345 = vld [vmem:[%s222 + $0x290] sm:$0xff]
        %v346 = vld [vmem:[%s222 + $0x298] sm:$0xff]
        %v347 = vld [vmem:[%s222 + $0x2a0] sm:$0xff]
        %v348 = vld [vmem:[%s222 + $0x2a8] sm:$0xff]
        %v349 = vld [vmem:[%s222 + $0x2b0] sm:$0xff]
        %v350 = vld [vmem:[%s222 + $0x2b8] sm:$0xff]
        %v351 = vld [vmem:[%s222 + $0x2c0] sm:$0xff]
        %v352 = vld [vmem:[%s222 + $0x2c8] sm:$0xff]
        %v353 = vld [vmem:[%s222 + $0x2d0] sm:$0xff]
        %v354 = vld [vmem:[%s222 + $0x2d8] sm:$0xff]
        %v355 = vld [vmem:[%s222 + $0x2e0] sm:$0xff]
        %v356 = vld [vmem:[%s222 + $0x2e8] sm:$0xff]
        %v357 = vld [vmem:[%s222 + $0x2f0] sm:$0xff]
        %v358 = vld [vmem:[%s222 + $0x2f8] sm:$0xff]
        %v359 = vld [vmem:[%s222 + $0x300] sm:$0xff]
        %v360 = vld [vmem:[%s222 + $0x308] sm:$0xff]
        %v361 = vld [vmem:[%s222 + $0x310] sm:$0xff]
        %v362 = vld [vmem:[%s222 + $0x318] sm:$0xff]
        %v363 = vld [vmem:[%s222 + $0x320] sm:$0xff]
        %v364 = vld [vmem:[%s222 + $0x328] sm:$0xff]
        %v365 = vld [vmem:[%s222 + $0x330] sm:$0xff]
        %v366 = vld [vmem:[%s222 + $0x338] sm:$0xff]
        %v367 = vld [vmem:[%s222 + $0x340] sm:$0xff]
        %v368 = vld [vmem:[%s222 + $0x348] sm:$0xff]
        %v369 = vld [vmem:[%s222 + $0x350] sm:$0xff]
        %v370 = vld [vmem:[%s222 + $0x358] sm:$0xff]
        %v371 = vld [vmem:[%s222 + $0x360] sm:$0xff]
        %v372 = vld [vmem:[%s222 + $0x368] sm:$0xff]
        %v373 = vld [vmem:[%s222 + $0x370] sm:$0xff]
        %v374 = vld [vmem:[%s222 + $0x378] sm:$0x33]
        %v375 = vld [vmem:[%s222 + $0x380] sm:$0x33]
        %v376 = vld [vmem:[%s222 + $0x388] sm:$0x33]
        %v377 = vunpack.c.l.bf16 %v263
        %v378 = vunpack.c.h.bf16 %v263
        %v379 = vunpack.c.l.bf16 %v264
        %v380 = vunpack.c.h.bf16 %v264
        %v381 = vunpack.c.l.bf16 %v265
        %v382 = vunpack.c.h.bf16 %v265
        %v383 = vunpack.c.l.bf16 %v266
        %v384 = vunpack.c.h.bf16 %v266
        %v385 = vunpack.c.l.bf16 %v267
        %v386 = vunpack.c.h.bf16 %v267
        %v387 = vunpack.c.l.bf16 %v268
        %v388 = vunpack.c.h.bf16 %v268
        %v389 = vunpack.c.l.bf16 %v269
        %v390 = vunpack.c.h.bf16 %v269
        %v391 = vunpack.c.l.bf16 %v270
        %v392 = vunpack.c.h.bf16 %v270
        %v393 = vunpack.c.l.bf16 %v271
        %v394 = vunpack.c.h.bf16 %v271
        %v395 = vunpack.c.l.bf16 %v272
        %v396 = vunpack.c.h.bf16 %v272
        %v397 = vunpack.c.l.bf16 %v273
        %v398 = vunpack.c.h.bf16 %v273
        %v399 = vunpack.c.l.bf16 %v274
        %v400 = vunpack.c.h.bf16 %v274
        %v401 = vunpack.c.l.bf16 %v275
        %v402 = vunpack.c.h.bf16 %v275
        %v403 = vunpack.c.l.bf16 %v276
        %v404 = vunpack.c.h.bf16 %v276
        %v405 = vunpack.c.l.bf16 %v277
        %v406 = vunpack.c.h.bf16 %v277
        %v407 = vunpack.c.l.bf16 %v278
        %v408 = vunpack.c.h.bf16 %v278
        %v409 = vunpack.c.l.bf16 %v279
        %v410 = vunpack.c.h.bf16 %v279
        %v411 = vunpack.c.l.bf16 %v280
        %v412 = vunpack.c.h.bf16 %v280
        %v413 = vunpack.c.l.bf16 %v281
        %v414 = vunpack.c.h.bf16 %v281
        %v415 = vunpack.c.l.bf16 %v282
        %v416 = vunpack.c.h.bf16 %v282
        %v417 = vunpack.c.l.bf16 %v283
        %v418 = vunpack.c.h.bf16 %v283
        %v419 = vunpack.c.l.bf16 %v284
        %v420 = vunpack.c.h.bf16 %v284
        %v421 = vunpack.c.l.bf16 %v285
        %v422 = vunpack.c.h.bf16 %v285
        %v423 = vunpack.c.l.bf16 %v286
        %v424 = vunpack.c.h.bf16 %v286
        %v425 = vunpack.c.l.bf16 %v287
        %v426 = vunpack.c.h.bf16 %v287
        %v427 = vunpack.c.l.bf16 %v288
        %v428 = vunpack.c.h.bf16 %v288
        %v429 = vunpack.c.l.bf16 %v289
        %v430 = vunpack.c.h.bf16 %v289
        %v431 = vunpack.c.l.bf16 %v290
        %v432 = vunpack.c.h.bf16 %v290
        %v433 = vunpack.c.l.bf16 %v291
        %v434 = vunpack.c.h.bf16 %v291
        %v435 = vunpack.c.l.bf16 %v292
        %v436 = vunpack.c.h.bf16 %v292
        %v437 = vunpack.c.l.bf16 %v293
        %v438 = vunpack.c.h.bf16 %v293
        %v439 = vunpack.c.l.bf16 %v294
        %v440 = vunpack.c.h.bf16 %v294
        %v441 = vunpack.c.l.bf16 %v295
        %v442 = vunpack.c.h.bf16 %v295
        %v443 = vunpack.c.l.bf16 %v296
        %v444 = vunpack.c.h.bf16 %v296
        %v445 = vunpack.c.l.bf16 %v297
        %v446 = vunpack.c.h.bf16 %v297
        %v447 = vunpack.c.l.bf16 %v298
        %v448 = vunpack.c.h.bf16 %v298
        %v449 = vunpack.c.l.bf16 %v299
        %v450 = vunpack.c.h.bf16 %v299
        %v451 = vunpack.c.l.bf16 %v300
        %v452 = vunpack.c.h.bf16 %v300
        %v453 = vunpack.c.l.bf16 %v301
        %v454 = vunpack.c.h.bf16 %v301
        %v455 = vunpack.c.l.bf16 %v302
        %v456 = vunpack.c.h.bf16 %v302
        %v457 = vunpack.c.l.bf16 %v303
        %v458 = vunpack.c.h.bf16 %v303
        %v459 = vunpack.c.l.bf16 %v304
        %v460 = vunpack.c.h.bf16 %v304
        %v461 = vunpack.c.l.bf16 %v305
        %v462 = vunpack.c.h.bf16 %v305
        %v463 = vunpack.c.l.bf16 %v306
        %v464 = vunpack.c.h.bf16 %v306
        %v465 = vunpack.c.l.bf16 %v307
        %v466 = vunpack.c.h.bf16 %v307
        %v467 = vunpack.c.l.bf16 %v308
        %v468 = vunpack.c.h.bf16 %v308
        %v469 = vunpack.c.l.bf16 %v309
        %v470 = vunpack.c.h.bf16 %v309
        %v471 = vunpack.c.l.bf16 %v310
        %v472 = vunpack.c.h.bf16 %v310
        %v473 = vunpack.c.l.bf16 %v311
        %v474 = vunpack.c.h.bf16 %v311
        %v475 = vunpack.c.l.bf16 %v312
        %v476 = vunpack.c.h.bf16 %v312
        %v477 = vunpack.c.l.bf16 %v313
        %v478 = vunpack.c.h.bf16 %v313
        %v479 = vunpack.c.l.bf16 %v314
        %v480 = vunpack.c.h.bf16 %v314
        %v481 = vunpack.c.l.bf16 %v315
        %v482 = vunpack.c.h.bf16 %v315
        %v483 = vunpack.c.l.bf16 %v316
        %v484 = vunpack.c.h.bf16 %v316
        %v485 = vunpack.c.l.bf16 %v317
        %v486 = vunpack.c.h.bf16 %v317
        %v487 = vunpack.c.l.bf16 %v318
        %v488 = vunpack.c.h.bf16 %v318
        %v489 = vunpack.c.l.bf16 %v319
        %v490 = vunpack.c.h.bf16 %v319
        %v491 = vunpack.c.l.bf16 %v320
        %v492 = vunpack.c.h.bf16 %v320
        %v493 = vunpack.c.l.bf16 %v321
        %v494 = vunpack.c.h.bf16 %v321
        %v495 = vunpack.c.l.bf16 %v322
        %v496 = vunpack.c.h.bf16 %v322
        %v497 = vunpack.c.l.bf16 %v323
        %v498 = vunpack.c.h.bf16 %v323
        %v499 = vunpack.c.l.bf16 %v324
        %v500 = vunpack.c.h.bf16 %v324
        %v501 = vunpack.c.l.bf16 %v325
        %v502 = vunpack.c.h.bf16 %v325
        %v503 = vunpack.c.l.bf16 %v326
        %v504 = vunpack.c.h.bf16 %v326
        %v505 = vunpack.c.l.bf16 %v327
        %v506 = vunpack.c.h.bf16 %v327
        %v507 = vunpack.c.l.bf16 %v328
        %v508 = vunpack.c.h.bf16 %v328
        %v509 = vunpack.c.l.bf16 %v329
        %v510 = vunpack.c.h.bf16 %v329
        %v511 = vunpack.c.l.bf16 %v330
        %v512 = vunpack.c.h.bf16 %v330
        %v513 = vunpack.c.l.bf16 %v331
        %v514 = vunpack.c.h.bf16 %v331
        %v515 = vunpack.c.l.bf16 %v332
        %v516 = vunpack.c.h.bf16 %v332
        %v517 = vunpack.c.l.bf16 %v333
        %v518 = vunpack.c.h.bf16 %v333
        %v519 = vunpack.c.l.bf16 %v334
        %v520 = vunpack.c.h.bf16 %v334
        %v521 = vunpack.c.l.bf16 %v335
        %v522 = vunpack.c.h.bf16 %v335
        %v523 = vunpack.c.l.bf16 %v336
        %v524 = vunpack.c.h.bf16 %v336
        %v525 = vunpack.c.l.bf16 %v337
        %v526 = vunpack.c.h.bf16 %v337
        %v527 = vunpack.c.l.bf16 %v338
        %v528 = vunpack.c.h.bf16 %v338
        %v529 = vunpack.c.l.bf16 %v339
        %v530 = vunpack.c.h.bf16 %v339
        %v531 = vunpack.c.l.bf16 %v340
        %v532 = vunpack.c.h.bf16 %v340
        %v533 = vunpack.c.l.bf16 %v341
        %v534 = vunpack.c.h.bf16 %v341
        %v535 = vunpack.c.l.bf16 %v342
        %v536 = vunpack.c.h.bf16 %v342
        %v537 = vunpack.c.l.bf16 %v343
        %v538 = vunpack.c.h.bf16 %v343
        %v539 = vunpack.c.l.bf16 %v344
        %v540 = vunpack.c.h.bf16 %v344
        %v541 = vunpack.c.l.bf16 %v345
        %v542 = vunpack.c.h.bf16 %v345
        %v543 = vunpack.c.l.bf16 %v346
        %v544 = vunpack.c.h.bf16 %v346
        %v545 = vunpack.c.l.bf16 %v347
        %v546 = vunpack.c.h.bf16 %v347
        %v547 = vunpack.c.l.bf16 %v348
        %v548 = vunpack.c.h.bf16 %v348
        %v549 = vunpack.c.l.bf16 %v349
        %v550 = vunpack.c.h.bf16 %v349
        %v551 = vunpack.c.l.bf16 %v350
        %v552 = vunpack.c.h.bf16 %v350
        %v553 = vunpack.c.l.bf16 %v351
        %v554 = vunpack.c.h.bf16 %v351
        %v555 = vunpack.c.l.bf16 %v352
        %v556 = vunpack.c.h.bf16 %v352
        %v557 = vunpack.c.l.bf16 %v353
        %v558 = vunpack.c.h.bf16 %v353
        %v559 = vunpack.c.l.bf16 %v354
        %v560 = vunpack.c.h.bf16 %v354
        %v561 = vunpack.c.l.bf16 %v355
        %v562 = vunpack.c.h.bf16 %v355
        %v563 = vunpack.c.l.bf16 %v356
        %v564 = vunpack.c.h.bf16 %v356
        %v565 = vunpack.c.l.bf16 %v357
        %v566 = vunpack.c.h.bf16 %v357
        %v567 = vunpack.c.l.bf16 %v358
        %v568 = vunpack.c.h.bf16 %v358
        %v569 = vunpack.c.l.bf16 %v359
        %v570 = vunpack.c.h.bf16 %v359
        %v571 = vunpack.c.l.bf16 %v360
        %v572 = vunpack.c.h.bf16 %v360
        %v573 = vunpack.c.l.bf16 %v361
        %v574 = vunpack.c.h.bf16 %v361
        %v575 = vunpack.c.l.bf16 %v362
        %v576 = vunpack.c.h.bf16 %v362
        %v577 = vunpack.c.l.bf16 %v363
        %v578 = vunpack.c.h.bf16 %v363
        %v579 = vunpack.c.l.bf16 %v364
        %v580 = vunpack.c.h.bf16 %v364
        %v581 = vunpack.c.l.bf16 %v365
        %v582 = vunpack.c.h.bf16 %v365
        %v583 = vunpack.c.l.bf16 %v366
        %v584 = vunpack.c.h.bf16 %v366
        %v585 = vunpack.c.l.bf16 %v367
        %v586 = vunpack.c.h.bf16 %v367
        %v587 = vunpack.c.l.bf16 %v368
        %v588 = vunpack.c.h.bf16 %v368
        %v589 = vunpack.c.l.bf16 %v369
        %v590 = vunpack.c.h.bf16 %v369
        %v591 = vunpack.c.l.bf16 %v370
        %v592 = vunpack.c.h.bf16 %v370
        %v593 = vunpack.c.l.bf16 %v371
        %v594 = vunpack.c.h.bf16 %v371
        %v595 = vunpack.c.l.bf16 %v372
        %v596 = vunpack.c.h.bf16 %v372
        %v597 = vunpack.c.l.bf16 %v373
        %v598 = vunpack.c.h.bf16 %v373
        %v599 = vunpack.c.l.bf16 %v374
        %v600 = vunpack.c.h.bf16 %v374
        %v601 = vunpack.c.l.bf16 %v375
        %v602 = vunpack.c.h.bf16 %v375
        %v603 = vunpack.c.l.bf16 %v376
        %v604 = vunpack.c.h.bf16 %v376
        %v605 = vld [vmem:[%s231] sm:$0x3f]
        %v607 = vlaneseq
        %v608 = vshrl.u32 %v607, 7
        %v609 = vsub.s32 0, %v608
        %v610 = vrot.slane %v605, %v609
        %v611 = vlaneseq
        %v612 = vshrl.u32 %v611, 7
        %v613 = vsub.s32 1, %v612
        %v614 = vrot.slane %v605, %v613
        %v615 = vlaneseq
        %v616 = vshrl.u32 %v615, 7
        %v617 = vsub.s32 2, %v616
        %v618 = vrot.slane %v605, %v617
        %v619 = vlaneseq
        %v620 = vshrl.u32 %v619, 7
        %v621 = vsub.s32 3, %v620
        %v622 = vrot.slane %v605, %v621
        %v623 = vlaneseq
        %v624 = vshrl.u32 %v623, 7
        %v625 = vsub.s32 4, %v624
        %v626 = vrot.slane %v605, %v625
        %v627 = vlaneseq
        %v628 = vshrl.u32 %v627, 7
        %v629 = vsub.s32 5, %v628
        %v630 = vrot.slane %v605, %v629
        %v638 = vcombine.high %v262, %v262
        %v640 = vunpack.c.l.s4 1983009808
        %v641 = vunpack.c.0.s8 %v640
        %v642 = vlaneseq
        %v643 = vshrl.u32 %v642, 7
        %v644 = vsub.s32 %v641, %v643
        %v645 = vrot.slane %v262, %v644
        %v647 = vunpack.c.l.s4 1983009808
        %v648 = vunpack.c.0.s8 %v647
        %v649 = vlaneseq
        %v650 = vshrl.u32 %v649, 7
        %v651 = vsub.s32 %v648, %v650
        %v652 = vrot.slane %v638, %v651
        %v653 = vcombine.high %v645, %v645
        %vm656 = vcmask 359424
        %v657 = vsel %vm656, %v652, 0
        %vm659 = vcmask 1043456
        %v661 = vsel %vm659, %v599, 0
        %v664 = vsel %vm659, %v600, 0
        %v667 = vsel %vm659, %v601, 0
        %v670 = vsel %vm659, %v602, 0
        %v673 = vsel %vm659, %v603, 0
        %v676 = vsel %vm659, %v604, 0
        %678 = vmatprep.subr.mxu0 %v378
        %679 = vmatpush1.msra.mxu0 %v377
        %680 = vmatprep.subr.mxu0 %v384
        %681 = vmatpush1.msra.mxu0 %v383
        %682 = vmatprep.subr.mxu0 %v390
        %683 = vmatpush1.msra.mxu0 %v389
        %684 = vmatprep.subr.mxu0 %v396
        %685 = vmatpush1.msra.mxu0 %v395
        %686 = vmatprep.subr.mxu0 %v402
        %687 = vmatpush1.msra.mxu0 %v401
        %688 = vmatprep.subr.mxu0 %v408
        %689 = vmatpush1.msra.mxu0 %v407
        %690 = vmatprep.subr.mxu0 %v414
        %691 = vmatpush1.msra.mxu0 %v413
        %692 = vmatprep.subr.mxu0 %v420
        %693 = vmatpush1.msra.mxu0 %v419
        %694 = vmatprep.subr.mxu0 %v426
        %695 = vmatpush1.msra.mxu0 %v425
        %696 = vmatprep.subr.mxu0 %v432
        %697 = vmatpush1.msra.mxu0 %v431
        %698 = vmatprep.subr.mxu0 %v438
        %699 = vmatpush1.msra.mxu0 %v437
        %700 = vmatprep.subr.mxu0 %v444
        %701 = vmatpush1.msra.mxu0 %v443
        %702 = vmatprep.subr.mxu0 %v450
        %703 = vmatpush1.msra.mxu0 %v449
        %704 = vmatprep.subr.mxu0 %v456
        %705 = vmatpush1.msra.mxu0 %v455
        %706 = vmatprep.subr.mxu0 %v462
        %707 = vmatpush1.msra.mxu0 %v461
        %708 = vmatprep.subr.mxu0 %v468
        %709 = vmatpush1.msra.mxu0 %v467
        %710 = vmatprep.subr.mxu0 %v474
        %711 = vmatpush1.msra.mxu0 %v473
        %712 = vmatprep.subr.mxu0 %v480
        %713 = vmatpush1.msra.mxu0 %v479
        %714 = vmatprep.subr.mxu0 %v486
        %715 = vmatpush1.msra.mxu0 %v485
        %716 = vmatprep.subr.mxu0 %v492
        %717 = vmatpush1.msra.mxu0 %v491
        %718 = vmatprep.subr.mxu0 %v498
        %719 = vmatpush1.msra.mxu0 %v497
        %720 = vmatprep.subr.mxu0 %v504
        %721 = vmatpush1.msra.mxu0 %v503
        %722 = vmatprep.subr.mxu0 %v510
        %723 = vmatpush1.msra.mxu0 %v509
        %724 = vmatprep.subr.mxu0 %v516
        %725 = vmatpush1.msra.mxu0 %v515
        %726 = vmatprep.subr.mxu0 %v522
        %727 = vmatpush1.msra.mxu0 %v521
        %728 = vmatprep.subr.mxu0 %v528
        %729 = vmatpush1.msra.mxu0 %v527
        %730 = vmatprep.subr.mxu0 %v534
        %731 = vmatpush1.msra.mxu0 %v533
        %732 = vmatprep.subr.mxu0 %v540
        %733 = vmatpush1.msra.mxu0 %v539
        %734 = vmatprep.subr.mxu0 %v546
        %735 = vmatpush1.msra.mxu0 %v545
        %736 = vmatprep.subr.mxu0 %v552
        %737 = vmatpush1.msra.mxu0 %v551
        %738 = vmatprep.subr.mxu0 %v558
        %739 = vmatpush1.msra.mxu0 %v557
        %740 = vmatprep.subr.mxu0 %v564
        %741 = vmatpush1.msra.mxu0 %v563
        %742 = vmatprep.mubr.f32.mxu0 %v653
        %743 = vmatmul.mubr.f32.gmra.mrb[0].mxu0 %v645
        %v744 = vpop.f32.mrb[0].mxu0
        %v745 = vadd.f32 %v610, %v744
        %v746 = vpop.f32.mrb[0].mxu0
        %v747 = vadd.f32 %v614, %v746
        %748 = vdwg.mxu0
        %749 = vmatprep.subr.mxu0 %v570
        %750 = vmatpush1.msra.mxu0 %v569
        %751 = vmatprep.subr.mxu0 %v576
        %752 = vmatpush1.msra.mxu0 %v575
        %753 = vmatprep.subr.mxu0 %v582
        %754 = vmatpush1.msra.mxu0 %v581
        %755 = vmatprep.subr.mxu0 %v588
        %756 = vmatpush1.msra.mxu0 %v587
        %757 = vmatprep.subr.mxu0 %v594
        %758 = vmatpush1.msra.mxu0 %v593
        %759 = vmatprep.subr.mxu0 %v664
        %760 = vmatpush1.msra.mxu0 %v661
        %761 = vmatprep.subr.mxu0 0.0
        %762 = vmatpush1.msra.mxu0 0.0
        %763 = vmatprep.subr.mxu0 0.0
        %764 = vmatpush1.msra.mxu0 0.0
        %765 = vmatprep.subr.mxu0 0.0
        %766 = vmatpush1.msra.mxu0 0.0
        %767 = vmatprep.subr.mxu0 0.0
        %768 = vmatpush1.msra.mxu0 0.0
        %769 = vmatprep.subr.mxu0 0.0
        %770 = vmatpush1.msra.mxu0 0.0
        %771 = vmatprep.subr.mxu0 0.0
        %772 = vmatpush1.msra.mxu0 0.0
        %773 = vmatprep.subr.mxu0 0.0
        %774 = vmatpush1.msra.mxu0 0.0
        %775 = vmatprep.subr.mxu0 0.0
        %776 = vmatpush1.msra.mxu0 0.0
        %777 = vmatprep.subr.mxu0 0.0
        %778 = vmatpush1.msra.mxu0 0.0
        %779 = vmatprep.subr.mxu0 0.0
        %780 = vmatpush1.msra.mxu0 0.0
        %781 = vmatprep.subr.mxu0 0.0
        %782 = vmatpush1.msra.mxu0 0.0
        %783 = vmatprep.subr.mxu0 0.0
        %784 = vmatpush1.msra.mxu0 0.0
        %785 = vmatprep.subr.mxu0 0.0
        %786 = vmatpush1.msra.mxu0 0.0
        %787 = vmatprep.subr.mxu0 0.0
        %788 = vmatpush1.msra.mxu0 0.0
        %789 = vmatprep.subr.mxu0 0.0
        %790 = vmatpush1.msra.mxu0 0.0
        %791 = vmatprep.subr.mxu0 0.0
        %792 = vmatpush1.msra.mxu0 0.0
        %793 = vmatprep.subr.mxu0 0.0
        %794 = vmatpush1.msra.mxu0 0.0
        %795 = vmatprep.subr.mxu0 0.0
        %796 = vmatpush1.msra.mxu0 0.0
        %797 = vmatprep.subr.mxu0 0.0
        %798 = vmatpush1.msra.mxu0 0.0
        %799 = vmatprep.subr.mxu0 0.0
        %800 = vmatpush1.msra.mxu0 0.0
        %801 = vmatprep.subr.mxu0 0.0
        %802 = vmatpush1.msra.mxu0 0.0
        %803 = vmatprep.subr.mxu0 0.0
        %804 = vmatpush1.msra.mxu0 0.0
        %805 = vmatprep.subr.mxu0 0.0
        %806 = vmatpush1.msra.mxu0 0.0
        %807 = vmatprep.subr.mxu0 0.0
        %808 = vmatpush1.msra.mxu0 0.0
        %809 = vmatprep.subr.mxu0 0.0
        %810 = vmatpush1.msra.mxu0 0.0
        %811 = vmatprep.subr.mxu0 0.0
        %812 = vmatpush1.msra.mxu0 0.0
        %813 = vmatprep.mubr.f32.mxu0 0.0
        %814 = vmatmul.mubr.f32.gmra.mrb[0].mxu0 %v657
        %v815 = vpop.f32.mrb[0].mxu0
        %v816 = vadd.f32 %v745, %v815
        %v817 = vpop.f32.mrb[0].mxu0
        %v818 = vadd.f32 %v747, %v817
        %819 = vdwg.mxu0
        %820 = vmatprep.subr.mxu0 %v380
        %821 = vmatpush1.msra.mxu0 %v379
        %822 = vmatprep.subr.mxu0 %v386
        %823 = vmatpush1.msra.mxu0 %v385
        %824 = vmatprep.subr.mxu0 %v392
        %825 = vmatpush1.msra.mxu0 %v391
        %826 = vmatprep.subr.mxu0 %v398
        %827 = vmatpush1.msra.mxu0 %v397
        %828 = vmatprep.subr.mxu0 %v404
        %829 = vmatpush1.msra.mxu0 %v403
        %830 = vmatprep.subr.mxu0 %v410
        %831 = vmatpush1.msra.mxu0 %v409
        %832 = vmatprep.subr.mxu0 %v416
        %833 = vmatpush1.msra.mxu0 %v415
        %834 = vmatprep.subr.mxu0 %v422
        %835 = vmatpush1.msra.mxu0 %v421
        %836 = vmatprep.subr.mxu0 %v428
        %837 = vmatpush1.msra.mxu0 %v427
        %838 = vmatprep.subr.mxu0 %v434
        %839 = vmatpush1.msra.mxu0 %v433
        %840 = vmatprep.subr.mxu0 %v440
        %841 = vmatpush1.msra.mxu0 %v439
        %842 = vmatprep.subr.mxu0 %v446
        %843 = vmatpush1.msra.mxu0 %v445
        %844 = vmatprep.subr.mxu0 %v452
        %845 = vmatpush1.msra.mxu0 %v451
        %846 = vmatprep.subr.mxu0 %v458
        %847 = vmatpush1.msra.mxu0 %v457
        %848 = vmatprep.subr.mxu0 %v464
        %849 = vmatpush1.msra.mxu0 %v463
        %850 = vmatprep.subr.mxu0 %v470
        %851 = vmatpush1.msra.mxu0 %v469
        %852 = vmatprep.subr.mxu0 %v476
        %853 = vmatpush1.msra.mxu0 %v475
        %854 = vmatprep.subr.mxu0 %v482
        %855 = vmatpush1.msra.mxu0 %v481
        %856 = vmatprep.subr.mxu0 %v488
        %857 = vmatpush1.msra.mxu0 %v487
        %858 = vmatprep.subr.mxu0 %v494
        %859 = vmatpush1.msra.mxu0 %v493
        %860 = vmatprep.subr.mxu0 %v500
        %861 = vmatpush1.msra.mxu0 %v499
        %862 = vmatprep.subr.mxu0 %v506
        %863 = vmatpush1.msra.mxu0 %v505
        %864 = vmatprep.subr.mxu0 %v512
        %865 = vmatpush1.msra.mxu0 %v511
        %866 = vmatprep.subr.mxu0 %v518
        %867 = vmatpush1.msra.mxu0 %v517
        %868 = vmatprep.subr.mxu0 %v524
        %869 = vmatpush1.msra.mxu0 %v523
        %870 = vmatprep.subr.mxu0 %v530
        %871 = vmatpush1.msra.mxu0 %v529
        %872 = vmatprep.subr.mxu0 %v536
        %873 = vmatpush1.msra.mxu0 %v535
        %874 = vmatprep.subr.mxu0 %v542
        %875 = vmatpush1.msra.mxu0 %v541
        %876 = vmatprep.subr.mxu0 %v548
        %877 = vmatpush1.msra.mxu0 %v547
        %878 = vmatprep.subr.mxu0 %v554
        %879 = vmatpush1.msra.mxu0 %v553
        %880 = vmatprep.subr.mxu0 %v560
        %881 = vmatpush1.msra.mxu0 %v559
        %882 = vmatprep.subr.mxu0 %v566
        %883 = vmatpush1.msra.mxu0 %v565
        %884 = vmatprep.mubr.f32.mxu0 %v653
        %885 = vmatmul.mubr.f32.gmra.mrb[0].mxu0 %v645
        %v886 = vpop.f32.mrb[0].mxu0
        %v887 = vadd.f32 %v618, %v886
        %v888 = vpop.f32.mrb[0].mxu0
        %v889 = vadd.f32 %v622, %v888
        %890 = vdwg.mxu0
        %891 = vmatprep.subr.mxu0 %v572
        %892 = vmatpush1.msra.mxu0 %v571
        %893 = vmatprep.subr.mxu0 %v578
        %894 = vmatpush1.msra.mxu0 %v577
        %895 = vmatprep.subr.mxu0 %v584
        %896 = vmatpush1.msra.mxu0 %v583
        %897 = vmatprep.subr.mxu0 %v590
        %898 = vmatpush1.msra.mxu0 %v589
        %899 = vmatprep.subr.mxu0 %v596
        %900 = vmatpush1.msra.mxu0 %v595
        %901 = vmatprep.subr.mxu0 %v670
        %902 = vmatpush1.msra.mxu0 %v667
        %903 = vmatprep.subr.mxu0 0.0
        %904 = vmatpush1.msra.mxu0 0.0
        %905 = vmatprep.subr.mxu0 0.0
        %906 = vmatpush1.msra.mxu0 0.0
        %907 = vmatprep.subr.mxu0 0.0
        %908 = vmatpush1.msra.mxu0 0.0
        %909 = vmatprep.subr.mxu0 0.0
        %910 = vmatpush1.msra.mxu0 0.0
        %911 = vmatprep.subr.mxu0 0.0
        %912 = vmatpush1.msra.mxu0 0.0
        %913 = vmatprep.subr.mxu0 0.0
        %914 = vmatpush1.msra.mxu0 0.0
        %915 = vmatprep.subr.mxu0 0.0
        %916 = vmatpush1.msra.mxu0 0.0
        %917 = vmatprep.subr.mxu0 0.0
        %918 = vmatpush1.msra.mxu0 0.0
        %919 = vmatprep.subr.mxu0 0.0
        %920 = vmatpush1.msra.mxu0 0.0
        %921 = vmatprep.subr.mxu0 0.0
        %922 = vmatpush1.msra.mxu0 0.0
        %923 = vmatprep.subr.mxu0 0.0
        %924 = vmatpush1.msra.mxu0 0.0
        %925 = vmatprep.subr.mxu0 0.0
        %926 = vmatpush1.msra.mxu0 0.0
        %927 = vmatprep.subr.mxu0 0.0
        %928 = vmatpush1.msra.mxu0 0.0
        %929 = vmatprep.subr.mxu0 0.0
        %930 = vmatpush1.msra.mxu0 0.0
        %931 = vmatprep.subr.mxu0 0.0
        %932 = vmatpush1.msra.mxu0 0.0
        %933 = vmatprep.subr.mxu0 0.0
        %934 = vmatpush1.msra.mxu0 0.0
        %935 = vmatprep.subr.mxu0 0.0
        %936 = vmatpush1.msra.mxu0 0.0
        %937 = vmatprep.subr.mxu0 0.0
        %938 = vmatpush1.msra.mxu0 0.0
        %939 = vmatprep.subr.mxu0 0.0
        %940 = vmatpush1.msra.mxu0 0.0
        %941 = vmatprep.subr.mxu0 0.0
        %942 = vmatpush1.msra.mxu0 0.0
        %943 = vmatprep.subr.mxu0 0.0
        %944 = vmatpush1.msra.mxu0 0.0
        %945 = vmatprep.subr.mxu0 0.0
        %946 = vmatpush1.msra.mxu0 0.0
        %947 = vmatprep.subr.mxu0 0.0
        %948 = vmatpush1.msra.mxu0 0.0
        %949 = vmatprep.subr.mxu0 0.0
        %950 = vmatpush1.msra.mxu0 0.0
        %951 = vmatprep.subr.mxu0 0.0
        %952 = vmatpush1.msra.mxu0 0.0
        %953 = vmatprep.subr.mxu0 0.0
        %954 = vmatpush1.msra.mxu0 0.0
        %955 = vmatprep.mubr.f32.mxu0 0.0
        %956 = vmatmul.mubr.f32.gmra.mrb[0].mxu0 %v657
        %v957 = vpop.f32.mrb[0].mxu0
        %v958 = vadd.f32 %v887, %v957
        %v959 = vpop.f32.mrb[0].mxu0
        %v960 = vadd.f32 %v889, %v959
        %961 = vdwg.mxu0
        %962 = vmatprep.subr.mxu0 %v382
        %963 = vmatpush1.msra.mxu0 %v381
        %964 = vmatprep.subr.mxu0 %v388
        %965 = vmatpush1.msra.mxu0 %v387
        %966 = vmatprep.subr.mxu0 %v394
        %967 = vmatpush1.msra.mxu0 %v393
        %968 = vmatprep.subr.mxu0 %v400
        %969 = vmatpush1.msra.mxu0 %v399
        %970 = vmatprep.subr.mxu0 %v406
        %971 = vmatpush1.msra.mxu0 %v405
        %972 = vmatprep.subr.mxu0 %v412
        %973 = vmatpush1.msra.mxu0 %v411
        %974 = vmatprep.subr.mxu0 %v418
        %975 = vmatpush1.msra.mxu0 %v417
        %976 = vmatprep.subr.mxu0 %v424
        %977 = vmatpush1.msra.mxu0 %v423
        %978 = vmatprep.subr.mxu0 %v430
        %979 = vmatpush1.msra.mxu0 %v429
        %980 = vmatprep.subr.mxu0 %v436
        %981 = vmatpush1.msra.mxu0 %v435
        %982 = vmatprep.subr.mxu0 %v442
        %983 = vmatpush1.msra.mxu0 %v441
        %984 = vmatprep.subr.mxu0 %v448
        %985 = vmatpush1.msra.mxu0 %v447
        %986 = vmatprep.subr.mxu0 %v454
        %987 = vmatpush1.msra.mxu0 %v453
        %988 = vmatprep.subr.mxu0 %v460
        %989 = vmatpush1.msra.mxu0 %v459
        %990 = vmatprep.subr.mxu0 %v466
        %991 = vmatpush1.msra.mxu0 %v465
        %992 = vmatprep.subr.mxu0 %v472
        %993 = vmatpush1.msra.mxu0 %v471
        %994 = vmatprep.subr.mxu0 %v478
        %995 = vmatpush1.msra.mxu0 %v477
        %996 = vmatprep.subr.mxu0 %v484
        %997 = vmatpush1.msra.mxu0 %v483
        %998 = vmatprep.subr.mxu0 %v490
        %999 = vmatpush1.msra.mxu0 %v489
        %1000 = vmatprep.subr.mxu0 %v496
        %1001 = vmatpush1.msra.mxu0 %v495
        %1002 = vmatprep.subr.mxu0 %v502
        %1003 = vmatpush1.msra.mxu0 %v501
        %1004 = vmatprep.subr.mxu0 %v508
        %1005 = vmatpush1.msra.mxu0 %v507
        %1006 = vmatprep.subr.mxu0 %v514
        %1007 = vmatpush1.msra.mxu0 %v513
        %1008 = vmatprep.subr.mxu0 %v520
        %1009 = vmatpush1.msra.mxu0 %v519
        %1010 = vmatprep.subr.mxu0 %v526
        %1011 = vmatpush1.msra.mxu0 %v525
        %1012 = vmatprep.subr.mxu0 %v532
        %1013 = vmatpush1.msra.mxu0 %v531
        %1014 = vmatprep.subr.mxu0 %v538
        %1015 = vmatpush1.msra.mxu0 %v537
        %1016 = vmatprep.subr.mxu0 %v544
        %1017 = vmatpush1.msra.mxu0 %v543
        %1018 = vmatprep.subr.mxu0 %v550
        %1019 = vmatpush1.msra.mxu0 %v549
        %1020 = vmatprep.subr.mxu0 %v556
        %1021 = vmatpush1.msra.mxu0 %v555
        %1022 = vmatprep.subr.mxu0 %v562
        %1023 = vmatpush1.msra.mxu0 %v561
        %1024 = vmatprep.subr.mxu0 %v568
        %1025 = vmatpush1.msra.mxu0 %v567
        %1026 = vmatprep.mubr.f32.mxu0 %v653
        %1027 = vmatmul.mubr.f32.gmra.mrb[0].mxu0 %v645
        %v1028 = vpop.f32.mrb[0].mxu0
        %v1029 = vadd.f32 %v626, %v1028
        %v1030 = vpop.f32.mrb[0].mxu0
        %v1031 = vadd.f32 %v630, %v1030
        %1032 = vdwg.mxu0
        %1033 = vmatprep.subr.mxu0 %v574
        %1034 = vmatpush1.msra.mxu0 %v573
        %1035 = vmatprep.subr.mxu0 %v580
        %1036 = vmatpush1.msra.mxu0 %v579
        %1037 = vmatprep.subr.mxu0 %v586
        %1038 = vmatpush1.msra.mxu0 %v585
        %1039 = vmatprep.subr.mxu0 %v592
        %1040 = vmatpush1.msra.mxu0 %v591
        %1041 = vmatprep.subr.mxu0 %v598
        %1042 = vmatpush1.msra.mxu0 %v597
        %1043 = vmatprep.subr.mxu0 %v676
        %1044 = vmatpush1.msra.mxu0 %v673
        %1045 = vmatprep.subr.mxu0 0.0
        %1046 = vmatpush1.msra.mxu0 0.0
        %1047 = vmatprep.subr.mxu0 0.0
        %1048 = vmatpush1.msra.mxu0 0.0
        %1049 = vmatprep.subr.mxu0 0.0
        %1050 = vmatpush1.msra.mxu0 0.0
        %1051 = vmatprep.subr.mxu0 0.0
        %1052 = vmatpush1.msra.mxu0 0.0
        %1053 = vmatprep.subr.mxu0 0.0
        %1054 = vmatpush1.msra.mxu0 0.0
        %1055 = vmatprep.subr.mxu0 0.0
        %1056 = vmatpush1.msra.mxu0 0.0
        %1057 = vmatprep.subr.mxu0 0.0
        %1058 = vmatpush1.msra.mxu0 0.0
        %1059 = vmatprep.subr.mxu0 0.0
        %1060 = vmatpush1.msra.mxu0 0.0
        %1061 = vmatprep.subr.mxu0 0.0
        %1062 = vmatpush1.msra.mxu0 0.0
        %1063 = vmatprep.subr.mxu0 0.0
        %1064 = vmatpush1.msra.mxu0 0.0
        %1065 = vmatprep.subr.mxu0 0.0
        %1066 = vmatpush1.msra.mxu0 0.0
        %1067 = vmatprep.subr.mxu0 0.0
        %1068 = vmatpush1.msra.mxu0 0.0
        %1069 = vmatprep.subr.mxu0 0.0
        %1070 = vmatpush1.msra.mxu0 0.0
        %1071 = vmatprep.subr.mxu0 0.0
        %1072 = vmatpush1.msra.mxu0 0.0
        %1073 = vmatprep.subr.mxu0 0.0
        %1074 = vmatpush1.msra.mxu0 0.0
        %1075 = vmatprep.subr.mxu0 0.0
        %1076 = vmatpush1.msra.mxu0 0.0
        %1077 = vmatprep.subr.mxu0 0.0
        %1078 = vmatpush1.msra.mxu0 0.0
        %1079 = vmatprep.subr.mxu0 0.0
        %1080 = vmatpush1.msra.mxu0 0.0
        %1081 = vmatprep.subr.mxu0 0.0
        %1082 = vmatpush1.msra.mxu0 0.0
        %1083 = vmatprep.subr.mxu0 0.0
        %1084 = vmatpush1.msra.mxu0 0.0
        %1085 = vmatprep.subr.mxu0 0.0
        %1086 = vmatpush1.msra.mxu0 0.0
        %1087 = vmatprep.subr.mxu0 0.0
        %1088 = vmatpush1.msra.mxu0 0.0
        %1089 = vmatprep.subr.mxu0 0.0
        %1090 = vmatpush1.msra.mxu0 0.0
        %1091 = vmatprep.subr.mxu0 0.0
        %1092 = vmatpush1.msra.mxu0 0.0
        %1093 = vmatprep.subr.mxu0 0.0
        %1094 = vmatpush1.msra.mxu0 0.0
        %1095 = vmatprep.subr.mxu0 0.0
        %1096 = vmatpush1.msra.mxu0 0.0
        %1097 = vmatprep.mubr.f32.mxu0 0.0
        %1098 = vmatmul.mubr.f32.gmra.mrb[0].mxu0 %v657
        %v1099 = vpop.f32.mrb[0].mxu0
        %v1100 = vadd.f32 %v1029, %v1099
        %v1101 = vpop.f32.mrb[0].mxu0
        %v1102 = vadd.f32 %v1031, %v1101
        %1103 = vdwg.mxu0
        %v1110 = vcombine.low %v816, %v818
        %v1111 = vcombine.low %v958, %v960
        %v1113 = vunpack.c.l.s4 1983009808
        %v1114 = vunpack.c.0.s8 %v1113
        %v1115 = vlaneseq
        %v1116 = vshrl.u32 %v1115, 7
        %v1117 = vsub.s32 %v1114, %v1116
        %v1118 = vrot.slane %v1110, %v1117
        %v1120 = vunpack.c.l.s4 1983009808
        %v1121 = vunpack.c.0.s8 %v1120
        %v1122 = vlaneseq
        %v1123 = vshrl.u32 %v1122, 7
        %v1124 = vsub.s32 %v1121, %v1123
        %v1125 = vrot.slane %v1111, %v1124
        %v1126 = vcombine.low %v1118, %v1125
        %v1127 = vcombine.low %v1100, %v1102
        %v1129 = vunpack.c.l.s4 1983009808
        %v1130 = vunpack.c.0.s8 %v1129
        %v1131 = vlaneseq
        %v1132 = vshrl.u32 %v1131, 7
        %v1133 = vsub.s32 %v1130, %v1132
        %v1134 = vrot.slane %v1127, %v1133
        %1137 = vst [vmem:[%s258] sm:$0xff] %v1126
        %1138 = vst [vmem:[%s258 + $0x8] sm:$0xf] %v1134
        %s1139 = sand.u32 %s121, 1
        %s1140 = scalar_lea.sflag [#allocation4], %s1139
        %s1141 = sand.u32 %s121, 1
        %s1142 = smul.addr %s1141, 12
        %s1143 = scalar_lea.vmem [#allocation8], %s1142
        // Predicated region
        $region45: #{fasttext_fc1.1} parent=31 // pred_check
          %p1144 = pneg %p131
        $region46: #{fasttext_fc1.1} parent=31 // pred_check_branch
          %1146 = sbr.rel (%p1144) target = $region48
        $region47: #{fasttext_fc1.1} parent=31 // pred_region
          %s1147 = smul.u32 6, %s26
          %s1149 = ssub.s32 192, 192
          %1150 = vsyncadd %s1140, %s1149
          %s1151 = smul.addr %s25, 12
          %s1152 = sadd.s32 %s1147, %s1151
          %s1153 = smul.addr %s1152, 32
          %s1154 = scalar_lea.hbm %s3, %s1153
          %s1156 = sshll.u32 %s1143, 4
          %s1157 = int_to_ptr.vmem [resolvable:$true] %s1156
          %1159 = dma.vmem_to_hbm [thread:$0]  %s1157, 192, %s1154, %s1140
        $region48: #{fasttext_fc1.1} parent=31 // pred_fallthru
          _
      $region32: #{fasttext_fc1.1} parent=5 // pred_fallthru
        _
      %p1160 = scmp.le.s32.totalorder 2, %s16
      // Predicated region
      $region49: #{fasttext_fc1.1} parent=5 // pred_check
        %p1161 = pneg %p1160
      $region50: #{fasttext_fc1.1} parent=5 // pred_check_branch
        %1163 = sbr.rel (%p1161) target = $region52
      $region51: #{fasttext_fc1.1} parent=5 // pred_region
        %s1164 = ssub.s32 %s16, 2
        // Predicated region
        $region53: #{fasttext_fc1.1} parent=51 // pred_check
          %p1165 = pneg %p137
        $region54: #{fasttext_fc1.1} parent=51 // pred_check_branch
          %1167 = sbr.rel (%p1165) target = $region56
        $region55: #{fasttext_fc1.1} parent=51 // pred_region
          %s1168 = sand.u32 %s122, 1
          %s1169 = scalar_lea.sflag [#allocation4], %s1168
          %s1170 = sand.u32 %s122, 1
          %s1171 = smul.addr %s1170, 12
          %s1172 = scalar_lea.vmem [#allocation8], %s1171
          %1173 = dma.done %s1169, 192
        $region56: #{fasttext_fc1.1} parent=51 // pred_fallthru
          _
      $region52: #{fasttext_fc1.1} parent=5 // pred_fallthru
        _
    $region6: #{fasttext_fc1.1} parent=1 // loop_footer
      %s20 = sadd.s32 1, %s16
    $region7: #{fasttext_fc1.1} parent=1 // loop_footer_branch
      %15 = sbr.rel target = $region3
    $region8: #{fasttext_fc1.1} parent=1 // loop_exit
      _
    %1174 = vsyncpa [#allocation3], 1
    %s1175 = scalar_lea.sflag [#allocation3], 1
    %1176 = vsyncpa %s1175, 1
    %1177 = vsyncpa [#allocation6], 1
    %s1178 = scalar_lea.sflag [#allocation6], 1
    %1179 = vsyncpa %s1178, 1
    %1180 = vsyncpa [#allocation4], 1
    %s1181 = scalar_lea.sflag [#allocation4], 1
    %1182 = vsyncpa %s1181, 1

</llo_original>
